<compile_context>
chip_gen: v7x
topology: tpu7x:2x2x1
jax: 0.10.0
libtpu: 0.0.40
codegen_flags: <defaults>
</compile_context>

<pallas_src>
import jax
import jax.numpy as jnp
import numpy as np
from jax.experimental import pallas as pl
from jax.experimental.pallas import tpu as pltpu


def _pick_row_tile(h, w, itemsize, sublane):
    """Rows per block: ~8 MiB per input buffer, rounded to the sublane tile."""
    target_bytes = 8 * 1024 * 1024
    tm = target_bytes // max(1, w * itemsize)
    tm = max(sublane, min(2048, (tm // sublane) * sublane))
    return h if tm >= h else tm


def smd2_conv2d(x, bias, *, row_tile=None):
    """x: (H, W) image (f32 or bf16), bias: (1,) f32. Returns a scalar f32."""
    x = jnp.asarray(x)
    if x.dtype not in (jnp.float32, jnp.bfloat16):
        x = x.astype(jnp.float32)
    bias = jnp.asarray(bias, jnp.float32).reshape(-1)
    H, W = x.shape
    if H < 2 or W < 2:
        # "valid" 2x2 conv output is empty -> the sum is 0.
        return jnp.zeros((), jnp.float32)

    sublane = 16 if x.dtype == jnp.bfloat16 else 8
    tm = row_tile if row_tile is not None else _pick_row_tile(
        H, W, x.dtype.itemsize, sublane)
    if tm >= H:
        tm = H                                   # single block = full height
    else:
        tm = max(sublane, (tm // sublane) * sublane)
    nb = pl.cdiv(H, tm)

    def kernel(x_ref, b_ref, o_ref):
        i = pl.program_id(0)
        xv = x_ref[...].astype(jnp.float32)            # (tm, W) tile, f32 math
        b = b_ref[0]
        # 2x2 kernel [[1,-1],[0,0]], cross-correlation, valid padding:
        #   conv[r, c] = x[r, c] - x[r, c+1] + bias,   r < H-1, c < W-1
        conv = xv[:, : W - 1] - xv[:, 1:] + b
        sq = conv * conv                               # |c| * |c| == c * c
        # Global row mask: drops the conv's invalid last row and any padded
        # tail rows of the final (uneven) block.
        row_ids = i * tm + jax.lax.broadcasted_iota(jnp.int32, sq.shape, 0)
        masked = jnp.where(row_ids < (H - 1), sq, 0.0)
        col = jnp.sum(masked, axis=1, keepdims=True)       # (tm, 1) lane reduce
        o_ref[...] = jnp.sum(col, axis=0, keepdims=True)   # (1, 1) block partial

    partials = pl.pallas_call(
        kernel,
        out_shape=jax.ShapeDtypeStruct((nb, 1, 1), jnp.float32),
        grid=(nb,),
        in_specs=[
            pl.BlockSpec((tm, W), lambda i: (i, 0)),    # row tile, full width
            pl.BlockSpec(memory_space=pltpu.SMEM),      # scalar bias
        ],
        # One partial per grid step -> independent output blocks, safe with
        # a "parallel" grid axis (v7x megacore).
        out_specs=pl.BlockSpec((None, 1, 1), lambda i: (i, 0, 0)),
        compiler_params=pltpu.CompilerParams(
            dimension_semantics=("parallel",),
            vmem_limit_bytes=32 * 1024 * 1024,
        ),
        cost_estimate=pl.CostEstimate(
            flops=3 * H * W,
            transcendentals=0,
            bytes_accessed=H * W * x.dtype.itemsize + 4 + nb * 4,
        ),
    )(x, bias)
    return jnp.sum(partials)


if __name__ == "__main__":
    # Module parameter-init parity (kernel_y is unused by the module forward).
    kernel_x = jnp.asarray(np.array([[[[1.0, -1.0], [0.0, 0.0]]]]), jnp.float32)
    kernel_y = jnp.asarray(np.array([[[[1.0, 0.0], [-1.0, 0.0]]]]), jnp.float32)
    bias0 = jnp.zeros((1,), jnp.float32)

    def ref_fn(img, b):
        # Pure-JAX reference of the PyTorch forward (both branches use kernel_x).
        h, w = img.shape
        c = img[: h - 1, : w - 1] - img[: h - 1, 1:] + b[0]
        return jnp.sum(c * c)   # == sum(|c| * |c|)

    key = jax.random.PRNGKey(0)

    # Case 1: small single-block image, module default zero bias.
    x1 = jax.random.normal(key, (16, 16), dtype=jnp.float32)
    r1 = jax.block_until_ready(smd2_conv2d(x1, bias0))
    e1 = ref_fn(x1, bias0)
    assert jnp.allclose(r1, e1, rtol=1e-5, atol=1e-4), (r1, e1)

    # Case 2: multi-block path with an uneven row tail (exercises the grid,
    # the global row mask and per-block partial sums) plus a non-zero bias.
    x2 = jax.random.normal(jax.random.fold_in(key, 1), (37, 256), dtype=jnp.float32)
    bias2 = jnp.asarray([0.25], jnp.float32)
    r2 = jax.block_until_ready(smd2_conv2d(x2, bias2, row_tile=8))
    e2 = ref_fn(x2, bias2)
    assert jnp.allclose(r2, e2, rtol=1e-5, atol=1e-4), (r2, e2)

    print("KERNEL_OK")
</pallas_src>

<mosaic_0001>
module attributes {stable_mosaic.version = 11 : i64} {
  func.func @kernel(%arg0: i32, %arg1: memref<16x16xf32, #tpu.memory_space<vmem>>, %arg2: memref<1xf32, #tpu.memory_space<smem>>, %arg3: memref<1x1x1xf32, #tpu.memory_space<vmem>>) attributes {dimension_semantics = [#tpu.dimension_semantics<parallel>], iteration_bounds = array<i64: 1>, scalar_prefetch = 0 : i64, scratch_operands = 0 : i64, tpu.core_type = #tpu.core_type<tc>, window_params = [{transform_indices = @transform_0, window_bounds = array<i64: 16, 16>}, {transform_indices = @transform_1, window_bounds = array<i64: 1>}, {transform_indices = @transform_2, window_bounds = array<i64: 1, 1, 1>}]} {
    %c0 = arith.constant 0 : index
    %c0_0 = arith.constant 0 : index
    %0 = vector.load %arg1[%c0, %c0_0] : memref<16x16xf32, #tpu.memory_space<vmem>>, vector<16x16xf32>
    %c0_1 = arith.constant 0 : index
    %1 = memref.load %arg2[%c0_1] : memref<1xf32, #tpu.memory_space<smem>>
    %2 = vector.extract_strided_slice %0 {offsets = [0, 0], sizes = [16, 15], strides = [1, 1]} : vector<16x16xf32> to vector<16x15xf32>
    %3 = vector.extract_strided_slice %0 {offsets = [0, 1], sizes = [16, 15], strides = [1, 1]} : vector<16x16xf32> to vector<16x15xf32>
    %4 = arith.subf %2, %3 : vector<16x15xf32>
    %5 = vector.broadcast %1 : f32 to vector<16x15xf32>
    %6 = arith.addf %4, %5 : vector<16x15xf32>
    %7 = arith.mulf %6, %6 : vector<16x15xf32>
    %c16_i32 = arith.constant 16 : i32
    %8 = arith.muli %arg0, %c16_i32 : i32
    %9 = tpu.iota {dimensions = array<i32: 0>} : vector<16x15xi32>
    %10 = vector.broadcast %8 : i32 to vector<16x15xi32>
    %11 = arith.addi %10, %9 : vector<16x15xi32>
    %c15_i32 = arith.constant 15 : i32
    %12 = vector.broadcast %c15_i32 : i32 to vector<16x15xi32>
    %13 = arith.cmpi slt, %11, %12 : vector<16x15xi32>
    %cst = arith.constant 0.000000e+00 : f32
    %14 = vector.broadcast %cst : f32 to vector<16x15xf32>
    %15 = arith.select %13, %7, %14 : vector<16x15xi1>, vector<16x15xf32>
    %cst_2 = arith.constant dense<0.000000e+00> : vector<16xf32>
    %16 = vector.multi_reduction <add>, %15, %cst_2 [1] : vector<16x15xf32> to vector<16xf32>
    %17 = vector.shape_cast %16 : vector<16xf32> to vector<16x1xf32>
    %cst_3 = arith.constant dense<0.000000e+00> : vector<1xf32>
    %18 = vector.multi_reduction <add>, %17, %cst_3 [0] : vector<16x1xf32> to vector<1xf32>
    %19 = vector.shape_cast %18 : vector<1xf32> to vector<1x1xf32>
    %c0_4 = arith.constant 0 : index
    %c0_5 = arith.constant 0 : index
    %c0_6 = arith.constant 0 : index
    %20 = vector.load %arg3[%c0_4, %c0_5, %c0_6] : memref<1x1x1xf32, #tpu.memory_space<vmem>>, vector<1x1x1xf32>
    %21 = vector.shape_cast %20 : vector<1x1x1xf32> to vector<1x1xf32>
    %22 = vector.shape_cast %19 : vector<1x1xf32> to vector<1x1x1xf32>
    tpu.vector_store %arg3[%c0_4, %c0_5, %c0_6], %22 {strides = array<i32>} : memref<1x1x1xf32, #tpu.memory_space<vmem>>, vector<1x1x1xf32>,
    return
  }
  func.func @transform_0(%arg0: i32) -> (i32, i32) {
    %c0_i32 = arith.constant 0 : i32
    %c0_i32_0 = arith.constant 0 : i32
    return %arg0, %c0_i32 : i32, i32
  }
  func.func @transform_1(%arg0: i32) -> i32 {
    %c0_i32 = arith.constant 0 : i32
    %c0_i32_0 = arith.constant 0 : i32
    return %c0_i32 : i32
  }
  func.func @transform_2(%arg0: i32) -> (i32, i32, i32) {
    %c0_i32 = arith.constant 0 : i32
    %c0_i32_0 = arith.constant 0 : i32
    %c0_i32_1 = arith.constant 0 : i32
    return %arg0, %c0_i32, %c0_i32_0 : i32, i32, i32
  }
}

</mosaic_0001>

<llo_original>
// kernel: tpu_custom_call.1
$region0: #{tpu_custom_call.1}
  #allocation0 [shape = 'u32[]', space=smem, size = 0x4, offset = 0x4, fixed_abs, tag = 'smem constant byte address 0x4 - core index']
  #allocation1 [shape = 'u32[144,128]{1,0:T(1,128)}', space=vmem, size = 0x12000, scoped, tag = 'internal scratch']
  #allocation2 [shape = 'f32[1]{0:T(128)S(6)}', space=smem, size = 0x200, scoped, tag = 'scoped memory for tpu_custom_call.1']
  %s0 = inlined_call_operand.hbm [shape: f32[16,16], index: 0, kind: input, shape index: {}]
  %s1 = inlined_call_operand.<no memory space> [shape: f32[1], index: 1, kind: input, shape index: {}]
  %s2 = inlined_call_operand.hbm [shape: f32[1,1,1], index: 2, kind: output, shape index: {}]
  %s3 = sld [smem:[#allocation0]]
  $region22: #{tpu_custom_call.1} parent=0
    _
  %s5 = ssub.s32 1, %s3
  %s6 = scalar_select 0, %s5, %s3
  %7 = sst [smem:[#allocation2]] %s1
  $region1: #{tpu_custom_call.1} parent=0
    #allocation3 [shape = 'u8[8192]{0}', space=vmem, size = 0x2000, scoped, tag = 'input window, operand 0, single buffered']
    #allocation4 [shape = 's32[1]{0}', space=sflag, size = 0x4, scoped, tag = 'scoped memory for tpu_custom_call.1']
    #allocation5 [shape = 's32[1]{0}', space=sflag, size = 0x4, scoped, tag = 'scoped memory for tpu_custom_call.1']
    #allocation6 [shape = 'u8[512]{0}', space=vmem, size = 0x400, scoped, tag = 'output window, operand 0, single buffered']
    %8 = vsyncpa [#allocation4], 0
    %9 = vsyncpa [#allocation5], 0
    // Predicated region
    $region2: #{tpu_custom_call.1} parent=1 // pred_check
      _
    $region3: #{tpu_custom_call.1} parent=1 // pred_check_branch
      %11 = sbr.rel (0) target = $region5
    $region4: #{tpu_custom_call.1} parent=1 // pred_region
      %s13 = ssub.s32 256, 256
      %14 = vsyncadd [#allocation4], %s13
      %s15 = sshll.u32 [#allocation3], 4
      %s16 = int_to_ptr.vmem [resolvable:$true] %s15
      %21 = dma.hbm_to_vmem [thread:$0]  %s0, 256, %s16, [#allocation4], 128, 128, 8
    $region5: #{tpu_custom_call.1} parent=1 // pred_fallthru
      _
    // Predicated region
    $region6: #{tpu_custom_call.1} parent=1 // pred_check
      _
    $region7: #{tpu_custom_call.1} parent=1 // pred_check_branch
      %23 = sbr.rel (0) target = $region9
    $region8: #{tpu_custom_call.1} parent=1 // pred_region
      _
    $region9: #{tpu_custom_call.1} parent=1 // pred_fallthru
      _
    // Predicated region
    $region10: #{tpu_custom_call.1} parent=1 // pred_check
      _
    $region11: #{tpu_custom_call.1} parent=1 // pred_check_branch
      %25 = sbr.rel (0) target = $region13
    $region12: #{tpu_custom_call.1} parent=1 // pred_region
      %26 = dma.done [#allocation4], 256
    $region13: #{tpu_custom_call.1} parent=1 // pred_fallthru
      _
    %v27 = vld [vmem:[#allocation3] sm:$0xff]
    %v28 = vld [vmem:[#allocation3 + $0x8] sm:$0xff]
    %s29 = sld [smem:[#allocation2]]
    %32 = vrot.lane.b32.xlu0 %v27, 127
    %v33 = vpop.permute.xlu0 %32
    %34 = vrot.lane.b32.xlu0 %v28, 127
    %v35 = vpop.permute.xlu0 %34
    %v38 = vsub.f32 %v27, %v33
    %v39 = vsub.f32 %v28, %v35
    %v40 = vstv %s29
    %v41 = vadd.f32 %v38, %v40
    %v42 = vadd.f32 %v39, %v40
    %v43 = vmul.f32 %v41, %v41
    %v44 = vmul.f32 %v42, %v42
    %s45 = smul.u32 0, 16
    %v46 = vlaneseq
    %v47 = vshrl.u32 %v46, 7
    %v48 = vadd.s32 %v47, 8
    %v49 = vstv %s45
    %v50 = vadd.s32 %v49, %v47
    %v51 = vadd.s32 %v49, %v48
    %vm52 = vcmp.lt.s32.totalorder %v50, 15
    %vm53 = vcmp.lt.s32.totalorder %v51, 15
    %v54 = vsel %vm52, %v43, 0.0
    %v55 = vsel %vm53, %v44, 0.0
    %vm56 = vcmask 121856
    %v57 = vsel %vm56, %v54, 0.0
    %58 = vadd.xlane.f32.xlu0 %v57
    %v59 = vpop.xlane.xlu0 %58
    %v60 = vsel %vm56, %v55, 0.0
    %61 = vadd.xlane.f32.xlu0 %v60
    %v62 = vpop.xlane.xlu0 %61
    %v63 = vadd.f32 %v59, %v62
    %v64 = vrot.slane %v63, 4
    %v65 = vadd.f32 %v63, %v64
    %v66 = vrot.slane %v65, 2
    %v67 = vadd.f32 %v65, %v66
    %v68 = vrot.slane %v67, 1
    %v69 = vadd.f32 %v67, %v68
    %vm70 = vcmask 0
    %71 = vst.msk [vmem:[#allocation6] sm:$0x1] %vm70, %v69
    // Predicated region
    $region14: #{tpu_custom_call.1} parent=1 // pred_check
      _
    $region15: #{tpu_custom_call.1} parent=1 // pred_check_branch
      %73 = sbr.rel (0) target = $region17
    $region16: #{tpu_custom_call.1} parent=1 // pred_region
      %s75 = ssub.s32 16, 16
      %76 = vsyncadd [#allocation5], %s75
      %s78 = sshll.u32 [#allocation6], 4
      %s79 = int_to_ptr.vmem [resolvable:$true] %s78
      %81 = dma.vmem_to_hbm [thread:$0]  %s79, 16, %s2, [#allocation5]
    $region17: #{tpu_custom_call.1} parent=1 // pred_fallthru
      _
    // Predicated region
    $region18: #{tpu_custom_call.1} parent=1 // pred_check
      _
    $region19: #{tpu_custom_call.1} parent=1 // pred_check_branch
      %83 = sbr.rel (0) target = $region21
    $region20: #{tpu_custom_call.1} parent=1 // pred_region
      %84 = dma.done [#allocation5], 16
    $region21: #{tpu_custom_call.1} parent=1 // pred_fallthru
      _
    %85 = vsyncpa [#allocation4], 1
    %86 = vsyncpa [#allocation5], 1

</llo_original>
